<compile_context>
chip_gen: v6e
topology: v6e:2x2x1
jax: 0.10.0
libtpu: 0.0.40
codegen_flags: <defaults>
</compile_context>

<pallas_src>
import functools

import jax
import jax.numpy as jnp
from jax.experimental import pallas as pl
from jax.experimental.pallas import tpu as pltpu


def _unembed_proj_kernel(x_ref, w_ref, b_ref, o_ref):
    # x_ref: (E, TL)   bf16 pixel tile (channels x spatial)
    # w_ref: (Co, E)   bf16 1x1-conv weight, resident across the grid
    # b_ref: (Co, 1)   f32 bias, resident
    # o_ref: (Co, TL)  f32 output tile (spatial on the lane axis -> lane-dense)
    acc = jnp.dot(w_ref[...], x_ref[...], preferred_element_type=jnp.float32)
    o_ref[...] = (acc + b_ref[...]).astype(o_ref.dtype)


def _pick_spatial_tile(hw, max_tile=2048):
    """Largest multiple of 128 that divides hw (capped); fall back to full hw."""
    if hw % 128 != 0:
        return hw
    best = 128
    cand = 128
    limit = min(hw, max_tile)
    while cand <= limit:
        if hw % cand == 0:
            best = cand
        cand += 128
    return best


def patch_unembed_forward(x, weight, bias, patch_size, out_chans,
                          compute_dtype=jnp.bfloat16):
    """PatchUnEmbed forward (default config: 1x1 conv + PixelShuffle).

    x:      (N, E, H, W) float32
    weight: (Co, E, 1, 1) with Co = out_chans * patch_size**2
    bias:   (Co,)
    returns (N, out_chans, H*patch_size, W*patch_size)
    """
    N, E, H, W = x.shape
    p = patch_size
    Co = out_chans * p * p
    assert weight.shape == (Co, E, 1, 1), "only the 1x1-conv default config is supported"

    HW = H * W
    TL = _pick_spatial_tile(HW)

    # Flatten spatial (contiguous trailing dims -> no data movement); channels
    # remain the contraction axis, so no im2col / NHWC transpose is required.
    x_flat = x.reshape(N, E, HW).astype(compute_dtype)
    w_mat = weight.reshape(Co, E).astype(compute_dtype)
    b_mat = bias.reshape(Co, 1).astype(jnp.float32)

    grid = (N, HW // TL)

    y = pl.pallas_call(
        _unembed_proj_kernel,
        out_shape=jax.ShapeDtypeStruct((N, Co, HW), jnp.float32),
        grid_spec=pl.GridSpec(
            grid=grid,
            in_specs=[
                pl.BlockSpec((None, E, TL), lambda n, j: (n, 0, j)),  # pixel tile
                pl.BlockSpec((Co, E), lambda n, j: (0, 0)),           # weight, resident
                pl.BlockSpec((Co, 1), lambda n, j: (0, 0)),           # bias, resident
            ],
            out_specs=pl.BlockSpec((None, Co, TL), lambda n, j: (n, 0, j)),
        ),
        compiler_params=pltpu.CompilerParams(
            dimension_semantics=("parallel", "parallel"),
        ),
    )(x_flat, w_mat, b_mat)

    # PixelShuffle(p): (N, C*p*p, H, W) -> (N, C, H*p, W*p)
    #   out[n, c, h*p+i, w*p+j] = y[n, c*p*p + i*p + j, h, w]
    y = y.reshape(N, out_chans, p, p, H, W)
    y = y.transpose(0, 1, 4, 2, 5, 3).reshape(N, out_chans, H * p, W * p)
    return y


def init_params(key, embed_dim, out_chans, patch_size):
    """Deterministic Conv2d-style init (kaiming-uniform-ish bounds), kernel_size=1."""
    kw, kb = jax.random.split(key)
    co = out_chans * patch_size ** 2
    fan_in = embed_dim  # * 1 * 1
    bound = 1.0 / jnp.sqrt(jnp.float32(fan_in))
    weight = jax.random.uniform(
        kw, (co, embed_dim, 1, 1), minval=-bound, maxval=bound, dtype=jnp.float32)
    bias = jax.random.uniform(
        kb, (co,), minval=-bound, maxval=bound, dtype=jnp.float32)
    return weight, bias


if __name__ == "__main__":
    # Small shapes consistent with the module (input channels = embed_dim).
    batch, embed_dim, spatial = 2, 32, 16
    patch_size, out_chans = 4, 3
    co = out_chans * patch_size ** 2

    key = jax.random.PRNGKey(0)
    kx, kp = jax.random.split(key)
    x = jax.random.normal(kx, (batch, embed_dim, spatial, spatial), dtype=jnp.float32)
    weight, bias = init_params(kp, embed_dim, out_chans, patch_size)

    fwd = jax.jit(functools.partial(patch_unembed_forward,
                                    patch_size=patch_size, out_chans=out_chans))
    y = jax.block_until_ready(fwd(x, weight, bias))

    # Reference: same bf16 input rounding, f32 1x1 conv + bias, then PixelShuffle.
    xb = x.astype(jnp.bfloat16).astype(jnp.float32)
    wb = weight.astype(jnp.bfloat16).astype(jnp.float32)
    y_conv = jax.lax.conv_general_dilated(
        xb, wb,
        window_strides=(1, 1), padding="VALID",
        dimension_numbers=("NCHW", "OIHW", "NCHW"),
        precision=jax.lax.Precision.HIGHEST,
    ) + bias.reshape(1, co, 1, 1)
    y_ref = y_conv.reshape(batch, out_chans, patch_size, patch_size, spatial, spatial)
    y_ref = y_ref.transpose(0, 1, 4, 2, 5, 3).reshape(
        batch, out_chans, spatial * patch_size, spatial * patch_size)

    assert y.shape == (batch, out_chans, spatial * patch_size, spatial * patch_size)
    assert jnp.allclose(y, y_ref, atol=2e-3, rtol=2e-3)
    print("KERNEL_OK")
</pallas_src>

<mosaic_0001>
module attributes {stable_mosaic.version = 11 : i64} {
  func.func @_unembed_proj_kernel(%arg0: i32, %arg1: i32, %arg2: memref<1x32x256xbf16, #tpu.memory_space<vmem>>, %arg3: memref<48x32xbf16, #tpu.memory_space<vmem>>, %arg4: memref<48x1xf32, #tpu.memory_space<vmem>>, %arg5: memref<1x48x256xf32, #tpu.memory_space<vmem>>) attributes {dimension_semantics = [#tpu.dimension_semantics<parallel>, #tpu.dimension_semantics<parallel>], iteration_bounds = array<i64: 2, 1>, scalar_prefetch = 0 : i64, scratch_operands = 0 : i64, tpu.core_type = #tpu.core_type<tc>, window_params = [{transform_indices = @transform_0, window_bounds = array<i64: 1, 32, 256>}, {pipeline_mode = #tpu.pipeline_mode<synchronous>, transform_indices = @transform_1, window_bounds = array<i64: 48, 32>}, {pipeline_mode = #tpu.pipeline_mode<synchronous>, transform_indices = @transform_2, window_bounds = array<i64: 48, 1>}, {transform_indices = @transform_3, window_bounds = array<i64: 1, 48, 256>}]} {
    %c0 = arith.constant 0 : index
    %c0_0 = arith.constant 0 : index
    %0 = vector.load %arg3[%c0, %c0_0] : memref<48x32xbf16, #tpu.memory_space<vmem>>, vector<48x32xbf16>
    %c0_1 = arith.constant 0 : index
    %c0_2 = arith.constant 0 : index
    %c0_3 = arith.constant 0 : index
    %1 = vector.load %arg2[%c0_1, %c0_2, %c0_3] : memref<1x32x256xbf16, #tpu.memory_space<vmem>>, vector<1x32x256xbf16>
    %2 = vector.shape_cast %1 : vector<1x32x256xbf16> to vector<32x256xbf16>
    %cst = arith.constant dense<0.000000e+00> : vector<48x256xf32>
    %3 = tpu.matmul %0, %2, %cst {dimension_numbers = #tpu.dot_dimension_numbers<[1], [0], [0], [1], [0, 0, 1, 1], [], []>} : vector<48x32xbf16>, vector<32x256xbf16>, vector<48x256xf32> -> vector<48x256xf32>
    %c0_4 = arith.constant 0 : index
    %c0_5 = arith.constant 0 : index
    %4 = vector.load %arg4[%c0_4, %c0_5] : memref<48x1xf32, #tpu.memory_space<vmem>>, vector<48x1xf32>
    %5 = vector.broadcast %4 : vector<48x1xf32> to vector<48x256xf32>
    %6 = arith.addf %3, %5 : vector<48x256xf32>
    %c0_6 = arith.constant 0 : index
    %c0_7 = arith.constant 0 : index
    %c0_8 = arith.constant 0 : index
    %7 = vector.load %arg5[%c0_6, %c0_7, %c0_8] : memref<1x48x256xf32, #tpu.memory_space<vmem>>, vector<1x48x256xf32>
    %8 = vector.shape_cast %7 : vector<1x48x256xf32> to vector<48x256xf32>
    %9 = vector.shape_cast %6 : vector<48x256xf32> to vector<1x48x256xf32>
    tpu.vector_store %arg5[%c0_6, %c0_7, %c0_8], %9 {strides = array<i32>} : memref<1x48x256xf32, #tpu.memory_space<vmem>>, vector<1x48x256xf32>,
    return
  }
  func.func @transform_0(%arg0: i32, %arg1: i32) -> (i32, i32, i32) {
    %c0_i32 = arith.constant 0 : i32
    %c0_i32_0 = arith.constant 0 : i32
    return %arg0, %c0_i32, %arg1 : i32, i32, i32
  }
  func.func @transform_1(%arg0: i32, %arg1: i32) -> (i32, i32) {
    %c0_i32 = arith.constant 0 : i32
    %c0_i32_0 = arith.constant 0 : i32
    %c0_i32_1 = arith.constant 0 : i32
    return %c0_i32, %c0_i32_0 : i32, i32
  }
  func.func @transform_2(%arg0: i32, %arg1: i32) -> (i32, i32) {
    %c0_i32 = arith.constant 0 : i32
    %c0_i32_0 = arith.constant 0 : i32
    %c0_i32_1 = arith.constant 0 : i32
    return %c0_i32, %c0_i32_0 : i32, i32
  }
  func.func @transform_3(%arg0: i32, %arg1: i32) -> (i32, i32, i32) {
    %c0_i32 = arith.constant 0 : i32
    %c0_i32_0 = arith.constant 0 : i32
    return %arg0, %c0_i32, %arg1 : i32, i32, i32
  }
}

</mosaic_0001>

<llo_original>
// kernel: patch_unembed_forward.1
$region0: #{patch_unembed_forward.1}
  #allocation0 [shape = 'u32[]', space=smem, size = 0x4, offset = 0x4, fixed_abs, tag = 'smem constant byte address 0x4 - core index']
  #allocation1 [shape = 'u32[144,128]{1,0:T(1,128)}', space=vmem, size = 0x12000, scoped, tag = 'internal scratch']
  %s0 = inlined_call_operand.vmem [shape: bf16[2,32,256], index: 0, kind: input, shape index: {}]
  %s1 = inlined_call_operand.vmem [shape: bf16[48,32], index: 1, kind: input, shape index: {}]
  %s2 = inlined_call_operand.vmem [shape: f32[48,1], index: 2, kind: input, shape index: {}]
  %s3 = inlined_call_operand.vmem [shape: f32[2,48,256], index: 3, kind: output, shape index: {}]
  %s4 = sld [smem:[#allocation0]]
  $region45: #{patch_unembed_forward.1} parent=0
    _
  %s6 = ssub.s32 1, %s4
  %s7 = scalar_select 0, %s6, %s4
  loop: start=0, step=1, limit=4
  $region2: #{patch_unembed_forward.1} parent=0 // loop_pre_header
    _
  $region3: #{patch_unembed_forward.1} parent=0 // loop_header
    %s9 = sphi 0, %s13
    %p10 = scmp.ge.s32.totalorder %s9, 4
    %s16 = sphi 0, %s28
    %s17 = sphi 0, %s24
    %s18 = sphi 0, %s16
    %s19 = sphi 0, %s17
    %s20 = sphi 0, %s18
    %s21 = sphi 0, %s19
    %s33 = sphi 0, %s35
    %s36 = sphi 0, %s33
    %s37 = sphi 0, %s36
    %s53 = sphi 0, %s37
    %s57 = sphi 0, %s57
    %s59 = sphi 0, %s57
    %s60 = sphi 0, %s59
    %s74 = sphi 0, %s60
    %s78 = sphi 0, %s78
    %s80 = sphi 0, %s78
    %s81 = sphi 0, %s80
    %s95 = sphi 0, %s81
    %s103 = sphi 0, %s105
    %s106 = sphi 0, %s103
    %s107 = sphi 0, %s106
    %s123 = sphi 0, %s107
  $region4: #{patch_unembed_forward.1} parent=0 // loop_header_branch
    %12 = sbr.rel (%p10) target = $region8
  $region5: #{patch_unembed_forward.1} parent=0 // loop_body
    %s14 = ssub.s32 %s9, 1
    %s15 = ssub.s32 %s9, 2
    %s22 = sadd.s32 1, %s17
    %p23 = scmp.ge.s32.totalorder %s22, 1
    %s24 = scalar_select %p23, 0, %s22
    %s25 = sadd.s32 1, %s16
    %s26 = scalar_select %p23, %s25, %s16
    %p27 = scmp.ge.s32.totalorder %s26, 2
    %s28 = scalar_select %p27, 0, %s26
    %s29 = ssub.s32 %s16, %s28
    %s30 = ssub.s32 %s17, %s24
    %s31 = sor.u32 %s29, %s30
    %p32 = scmp.eq.s32.totalorder %s31, 0
    %s34 = sadd.s32 %s33, 1
    %s35 = scalar_select %p32, %s33, %s34
    %p38 = pneg %p32
    %p39 = scmp.eq.s32.totalorder %s9, 1
    %p40 = por %p38, %p39
    %p41 = scmp.ne.s32.totalorder %s33, %s36
    %p42 = scmp.eq.s32.totalorder %s9, 0
    %p43 = por %p41, %p42
    %p44 = scmp.ne.s32.totalorder %s33, %s36
    %p45 = scmp.eq.s32.totalorder %s14, 1
    %p46 = por %p44, %p45
    %p47 = scmp.ne.s32.totalorder %s36, %s37
    %p48 = scmp.eq.s32.totalorder %s14, 0
    %p49 = por %p47, %p48
    %p50 = scmp.ne.s32.totalorder %s36, %s37
    %p51 = scmp.eq.s32.totalorder %s15, 1
    %p52 = por %p50, %p51
    %p54 = scmp.ne.s32.totalorder %s37, %s53
    %p55 = scmp.eq.s32.totalorder %s15, 0
    %p56 = por %p54, %p55
    %s58 = sadd.s32 %s57, 1
    %p61 = scmp.eq.s32.totalorder %s9, 1
    %p62 = scmp.ne.s32.totalorder %s57, %s59
    %p63 = scmp.eq.s32.totalorder %s9, 0
    %p64 = por %p62, %p63
    %p65 = scmp.ne.s32.totalorder %s57, %s59
    %p66 = scmp.eq.s32.totalorder %s14, 1
    %p67 = por %p65, %p66
    %p68 = scmp.ne.s32.totalorder %s59, %s60
    %p69 = scmp.eq.s32.totalorder %s14, 0
    %p70 = por %p68, %p69
    %p71 = scmp.ne.s32.totalorder %s59, %s60
    %p72 = scmp.eq.s32.totalorder %s15, 1
    %p73 = por %p71, %p72
    %p75 = scmp.ne.s32.totalorder %s60, %s74
    %p76 = scmp.eq.s32.totalorder %s15, 0
    %p77 = por %p75, %p76
    %s79 = sadd.s32 %s78, 1
    %p82 = scmp.eq.s32.totalorder %s9, 1
    %p83 = scmp.ne.s32.totalorder %s78, %s80
    %p84 = scmp.eq.s32.totalorder %s9, 0
    %p85 = por %p83, %p84
    %p86 = scmp.ne.s32.totalorder %s78, %s80
    %p87 = scmp.eq.s32.totalorder %s14, 1
    %p88 = por %p86, %p87
    %p89 = scmp.ne.s32.totalorder %s80, %s81
    %p90 = scmp.eq.s32.totalorder %s14, 0
    %p91 = por %p89, %p90
    %p92 = scmp.ne.s32.totalorder %s80, %s81
    %p93 = scmp.eq.s32.totalorder %s15, 1
    %p94 = por %p92, %p93
    %p96 = scmp.ne.s32.totalorder %s81, %s95
    %p97 = scmp.eq.s32.totalorder %s15, 0
    %p98 = por %p96, %p97
    %s99 = ssub.s32 %s16, %s28
    %s100 = ssub.s32 %s17, %s24
    %s101 = sor.u32 %s99, %s100
    %p102 = scmp.eq.s32.totalorder %s101, 0
    %s104 = sadd.s32 %s103, 1
    %s105 = scalar_select %p102, %s103, %s104
    %p108 = pneg %p102
    %p109 = scmp.eq.s32.totalorder %s9, 1
    %p110 = por %p108, %p109
    %p111 = scmp.ne.s32.totalorder %s103, %s106
    %p112 = scmp.eq.s32.totalorder %s9, 0
    %p113 = por %p111, %p112
    %p114 = scmp.ne.s32.totalorder %s103, %s106
    %p115 = scmp.eq.s32.totalorder %s14, 1
    %p116 = por %p114, %p115
    %p117 = scmp.ne.s32.totalorder %s106, %s107
    %p118 = scmp.eq.s32.totalorder %s14, 0
    %p119 = por %p117, %p118
    %p120 = scmp.ne.s32.totalorder %s106, %s107
    %p121 = scmp.eq.s32.totalorder %s15, 1
    %p122 = por %p120, %p121
    %p124 = scmp.ne.s32.totalorder %s107, %s123
    %p125 = scmp.eq.s32.totalorder %s15, 0
    %p126 = por %p124, %p125
    %p127 = scmp.le.s32.totalorder 1, %s9
    %p128 = scmp.lt.s32.totalorder %s9, 3
    %p129 = pnand %p127, %p128
    %p130 = pneg %p129
    // Predicated region
    $region9: #{patch_unembed_forward.1} parent=5 // pred_check
      _
    $region10: #{patch_unembed_forward.1} parent=5 // pred_check_branch
      %132 = sbr.rel (%p129) target = $region12
    $region11: #{patch_unembed_forward.1} parent=5 // pred_region
      %s133 = ssub.s32 %s9, 1
      // Predicated region
      $region13: #{patch_unembed_forward.1} parent=11 // pred_check
        %p134 = pneg %p70
      $region14: #{patch_unembed_forward.1} parent=11 // pred_check_branch
        %136 = sbr.rel (%p134) target = $region16
      $region15: #{patch_unembed_forward.1} parent=11 // pred_region
        _
      $region16: #{patch_unembed_forward.1} parent=11 // pred_fallthru
        _
      // Predicated region
      $region17: #{patch_unembed_forward.1} parent=11 // pred_check
        %p137 = pneg %p91
      $region18: #{patch_unembed_forward.1} parent=11 // pred_check_branch
        %139 = sbr.rel (%p137) target = $region20
      $region19: #{patch_unembed_forward.1} parent=11 // pred_region
        _
      $region20: #{patch_unembed_forward.1} parent=11 // pred_fallthru
        _
    $region12: #{patch_unembed_forward.1} parent=5 // pred_fallthru
      _
    %p140 = scmp.lt.s32.totalorder %s9, 2
    // Predicated region
    $region21: #{patch_unembed_forward.1} parent=5 // pred_check
      %p141 = pneg %p140
    $region22: #{patch_unembed_forward.1} parent=5 // pred_check_branch
      %143 = sbr.rel (%p141) target = $region24
    $region23: #{patch_unembed_forward.1} parent=5 // pred_region
      // Predicated region
      $region25: #{patch_unembed_forward.1} parent=23 // pred_check
        %p144 = pneg %p43
      $region26: #{patch_unembed_forward.1} parent=23 // pred_check_branch
        %146 = sbr.rel (%p144) target = $region28
      $region27: #{patch_unembed_forward.1} parent=23 // pred_region
        %s147 = smul.u32 2, %s17
        %p148 = scmp.lt.s32.totalorder %s16, 1
        %s149 = scalar_select %p148, %s16, 1
        %p150 = scmp.lt.s32.totalorder %s147, 1
        %s151 = scalar_select %p150, %s147, 1
        %s152 = smul.addr %s149, 8
        %s153 = sadd.s32 %s151, %s152
        %s154 = smul.addr %s153, 4
        %s155 = scalar_lea.vmem %s0, %s154
        %s156 = smul.u32 2, %s17
      $region28: #{patch_unembed_forward.1} parent=23 // pred_fallthru
        _
    $region24: #{patch_unembed_forward.1} parent=5 // pred_fallthru
      _
    %p157 = scmp.le.s32.totalorder 1, %s9
    %p158 = scmp.lt.s32.totalorder %s9, 3
    %p159 = pnand %p157, %p158
    %p160 = pneg %p159
    // Predicated region
    $region29: #{patch_unembed_forward.1} parent=5 // pred_check
      _
    $region30: #{patch_unembed_forward.1} parent=5 // pred_check_branch
      %162 = sbr.rel (%p159) target = $region32
    $region31: #{patch_unembed_forward.1} parent=5 // pred_region
      %s163 = ssub.s32 %s9, 1
      %s164 = smul.u32 2, %s19
      %p165 = scmp.lt.s32.totalorder %s18, 1
      %s166 = scalar_select %p165, %s18, 1
      %p167 = scmp.lt.s32.totalorder %s164, 1
      %s168 = scalar_select %p167, %s164, 1
      %s169 = smul.addr %s166, 8
      %s170 = sadd.s32 %s168, %s169
      %s171 = smul.addr %s170, 4
      %s172 = scalar_lea.vmem %s0, %s171
      %p173 = pneg %p49
      %p174 = pneg %p46
      %p175 = pneg %p70
      %p176 = pneg %p67
      %p177 = pneg %p91
      %p178 = pneg %p88
      %p179 = pneg %p119
      %p180 = pneg %p116
      %s181 = smul.u32 2, %s19
      %p182 = scmp.lt.s32.totalorder %s18, 1
      %s183 = scalar_select %p182, %s18, 1
      %p184 = scmp.lt.s32.totalorder %s181, 1
      %s185 = scalar_select %p184, %s181, 1
      %s186 = smul.addr %s183, 12
      %s187 = sadd.s32 %s185, %s186
      %s188 = smul.addr %s187, 8
      %s189 = scalar_lea.vmem %s3, %s188
      %s190 = smul.u32 2, %s19
      %p191 = scmp.lt.s32.totalorder %s18, 1
      %s192 = scalar_select %p191, %s18, 1
      %p193 = scmp.lt.s32.totalorder %s190, 1
      %s194 = scalar_select %p193, %s190, 1
      %s195 = smul.addr %s192, 8
      %s196 = sadd.s32 %s194, %s195
      %s197 = smul.addr %s196, 4
      %s198 = scalar_lea.vmem %s0, %s197
      %s199 = smul.u32 2, %s19
      %s200 = smul.u32 2, %s19
      %p201 = scmp.lt.s32.totalorder %s18, 1
      %s202 = scalar_select %p201, %s18, 1
      %p203 = scmp.lt.s32.totalorder %s200, 1
      %s204 = scalar_select %p203, %s200, 1
      %s205 = smul.addr %s202, 12
      %s206 = sadd.s32 %s204, %s205
      %s207 = smul.addr %s206, 8
      %s208 = scalar_lea.vmem %s3, %s207
      %s209 = smul.u32 2, %s19
      %v211 = vld [vmem:[%s1] sm:$0xf]
      %v212 = vld [vmem:[%s1 + $0x4] sm:$0xf]
      %v213 = vld [vmem:[%s1 + $0x8] sm:$0xf]
      %v214 = vld [vmem:[%s1 + $0xc] sm:$0xf]
      %v215 = vld [vmem:[%s1 + $0x10] sm:$0xf]
      %v216 = vld [vmem:[%s1 + $0x14] sm:$0xf]
      %v217 = vld [vmem:[%s198] sm:$0xff]
      %v218 = vld [vmem:[%s198 + $0x8] sm:$0xff]
      %v219 = vld [vmem:[%s198 + $0x10] sm:$0xff]
      %v220 = vld [vmem:[%s198 + $0x18] sm:$0xff]
      %v221 = vld [vmem:[%s2] sm:$0xff]
      %v222 = vld [vmem:[%s2 + $0x8] sm:$0xff]
      %v223 = vld [vmem:[%s2 + $0x10] sm:$0xff]
      %v224 = vld [vmem:[%s2 + $0x18] sm:$0xff]
      %v225 = vld [vmem:[%s2 + $0x20] sm:$0xff]
      %v226 = vld [vmem:[%s2 + $0x28] sm:$0xff]
      %228 = vset.pattern.permute.xlu0 0
      %229 = vperm.xlu0 %228, %v221
      %v230 = vpop.permute.xlu0 %229
      %233 = vset.pattern.permute.xlu0 0
      %234 = vperm.xlu0 %233, %v222
      %v235 = vpop.permute.xlu0 %234
      %238 = vset.pattern.permute.xlu0 0
      %239 = vperm.xlu0 %238, %v223
      %v240 = vpop.permute.xlu0 %239
      %243 = vset.pattern.permute.xlu0 0
      %244 = vperm.xlu0 %243, %v224
      %v245 = vpop.permute.xlu0 %244
      %248 = vset.pattern.permute.xlu0 0
      %249 = vperm.xlu0 %248, %v225
      %v250 = vpop.permute.xlu0 %249
      %253 = vset.pattern.permute.xlu0 0
      %254 = vperm.xlu0 %253, %v226
      %v255 = vpop.permute.xlu0 %254
      %v263 = vunpack.c.l.b16 %v211
      %v264 = vunpack.c.l.b16 %v212
      %v265 = vunpack.c.l.b16 %v213
      %v266 = vunpack.c.l.b16 %v214
      %v267 = vunpack.c.l.b16 %v215
      %v268 = vunpack.c.l.b16 %v216
      %v269 = vpack.c.b16 %v264, %v263
      %v270 = vpack.c.b16 %v266, %v265
      %v271 = vpack.c.b16 %v268, %v267
      %v276 = vunpack.c.l.b16 %v217
      %v277 = vunpack.c.h.b16 %v217
      %v278 = vunpack.c.l.b16 %v218
      %v279 = vunpack.c.h.b16 %v218
      %v280 = vunpack.c.l.b16 %v219
      %v281 = vunpack.c.h.b16 %v219
      %v282 = vunpack.c.l.b16 %v220
      %v283 = vunpack.c.h.b16 %v220
      %v284 = vpack.c.b16 %v278, %v276
      %v285 = vpack.c.b16 %v279, %v277
      %v286 = vpack.c.b16 %v282, %v280
      %v287 = vpack.c.b16 %v283, %v281
      %vm292 = vcmask 261120
      %v294 = vsel %vm292, %v269, 0
      %v297 = vsel %vm292, %v270, 0
      %v300 = vsel %vm292, %v271, 0
      %302 = vmatprep.subr.bf16.mxu0 0
      %303 = vmatpush1.bf16.msra.mxu0 0
      %304 = vmatprep.subr.bf16.mxu0 0
      %305 = vmatpush1.bf16.msra.mxu0 0
      %306 = vmatprep.subr.bf16.mxu0 0
      %307 = vmatpush1.bf16.msra.mxu0 0
      %308 = vmatprep.subr.bf16.mxu0 0
      %309 = vmatpush1.bf16.msra.mxu0 0
      %310 = vmatprep.subr.bf16.mxu0 0
      %311 = vmatpush1.bf16.msra.mxu0 0
      %312 = vmatprep.subr.bf16.mxu0 0
      %313 = vmatpush1.bf16.msra.mxu0 0
      %314 = vmatprep.subr.bf16.mxu0 %v287
      %315 = vmatpush1.bf16.msra.mxu0 %v286
      %316 = vmatprep.subr.bf16.mxu0 %v285
      %317 = vmatpush1.bf16.msra.mxu0 %v284
      %318 = vmatprep.subr.bf16.mxu0 0
      %319 = vmatpush2.bf16.msra.mxu0 0
      %320 = vmatprep.subr.bf16.mxu0 0
      %321 = vmatpush2.bf16.msra.mxu0 0
      %322 = vmatprep.subr.bf16.mxu0 0
      %323 = vmatpush2.bf16.msra.mxu0 0
      %324 = vmatprep.subr.bf16.mxu0 0
      %325 = vmatpush2.bf16.msra.mxu0 0
      %326 = vmatprep.subr.bf16.mxu0 0
      %327 = vmatpush2.bf16.msra.mxu0 0
      %328 = vmatprep.subr.bf16.mxu0 0
      %329 = vmatpush2.bf16.msra.mxu0 0
      %330 = vmatprep.subr.bf16.mxu0 0
      %331 = vmatpush2.bf16.msra.mxu0 0
      %332 = vmatprep.subr.bf16.mxu0 0
      %333 = vmatpush2.bf16.msra.mxu0 0
      %334 = vmatprep.mubr.bf16.mxu0 0
      %335 = vmatmul.mubr.bf16.gmra.mxu0 %v294
      %v336 = vpop.f32.mrf.mxu0
      %v337 = vadd.f32 %v230, %v336
      %v338 = vpop.f32.mrf.mxu0
      %v339 = vadd.f32 %v230, %v338
      %v340 = vpop.f32.mrf.mxu0
      %v341 = vadd.f32 %v235, %v340
      %v342 = vpop.f32.mrf.mxu0
      %v343 = vadd.f32 %v235, %v342
      %344 = vmatprep.mubr.bf16.mxu0 0
      %345 = vmatmul.mubr.bf16.gmra.mxu0 %v297
      %v346 = vpop.f32.mrf.mxu0
      %v347 = vadd.f32 %v240, %v346
      %v348 = vpop.f32.mrf.mxu0
      %v349 = vadd.f32 %v240, %v348
      %v350 = vpop.f32.mrf.mxu0
      %v351 = vadd.f32 %v245, %v350
      %v352 = vpop.f32.mrf.mxu0
      %v353 = vadd.f32 %v245, %v352
      %354 = vmatprep.mubr.bf16.mxu0 0
      %355 = vmatmul.mubr.bf16.gmra.mxu0 %v300
      %v356 = vpop.f32.mrf.mxu0
      %v357 = vadd.f32 %v250, %v356
      %v358 = vpop.f32.mrf.mxu0
      %v359 = vadd.f32 %v250, %v358
      %v360 = vpop.f32.mrf.mxu0
      %v361 = vadd.f32 %v255, %v360
      %v362 = vpop.f32.mrf.mxu0
      %v363 = vadd.f32 %v255, %v362
      %364 = vdwg.mxu0
      %365 = vst [vmem:[%s208] sm:$0xff] %v337
      %366 = vst [vmem:[%s208 + $0x8] sm:$0xff] %v339
      %367 = vst [vmem:[%s208 + $0x10] sm:$0xff] %v341
      %368 = vst [vmem:[%s208 + $0x18] sm:$0xff] %v343
      %369 = vst [vmem:[%s208 + $0x20] sm:$0xff] %v347
      %370 = vst [vmem:[%s208 + $0x28] sm:$0xff] %v349
      %371 = vst [vmem:[%s208 + $0x30] sm:$0xff] %v351
      %372 = vst [vmem:[%s208 + $0x38] sm:$0xff] %v353
      %373 = vst [vmem:[%s208 + $0x40] sm:$0xff] %v357
      %374 = vst [vmem:[%s208 + $0x48] sm:$0xff] %v359
      %375 = vst [vmem:[%s208 + $0x50] sm:$0xff] %v361
      %376 = vst [vmem:[%s208 + $0x58] sm:$0xff] %v363
      %s377 = smul.u32 2, %s19
      %p378 = scmp.lt.s32.totalorder %s18, 1
      %s379 = scalar_select %p378, %s18, 1
      %p380 = scmp.lt.s32.totalorder %s377, 1
      %s381 = scalar_select %p380, %s377, 1
      %s382 = smul.addr %s379, 12
      %s383 = sadd.s32 %s381, %s382
      %s384 = smul.addr %s383, 8
      %s385 = scalar_lea.vmem %s3, %s384
      // Predicated region
      $region33: #{patch_unembed_forward.1} parent=31 // pred_check
        %p386 = pneg %p116
      $region34: #{patch_unembed_forward.1} parent=31 // pred_check_branch
        %388 = sbr.rel (%p386) target = $region36
      $region35: #{patch_unembed_forward.1} parent=31 // pred_region
        %s389 = smul.u32 2, %s19
      $region36: #{patch_unembed_forward.1} parent=31 // pred_fallthru
        _
    $region32: #{patch_unembed_forward.1} parent=5 // pred_fallthru
      _
    %p390 = scmp.le.s32.totalorder 2, %s9
    // Predicated region
    $region37: #{patch_unembed_forward.1} parent=5 // pred_check
      %p391 = pneg %p390
    $region38: #{patch_unembed_forward.1} parent=5 // pred_check_branch
      %393 = sbr.rel (%p391) target = $region40
    $region39: #{patch_unembed_forward.1} parent=5 // pred_region
      %s394 = ssub.s32 %s9, 2
      // Predicated region
      $region41: #{patch_unembed_forward.1} parent=39 // pred_check
        %p395 = pneg %p122
      $region42: #{patch_unembed_forward.1} parent=39 // pred_check_branch
        %397 = sbr.rel (%p395) target = $region44
      $region43: #{patch_unembed_forward.1} parent=39 // pred_region
        %s398 = smul.u32 2, %s21
        %p399 = scmp.lt.s32.totalorder %s20, 1
        %s400 = scalar_select %p399, %s20, 1
        %p401 = scmp.lt.s32.totalorder %s398, 1
        %s402 = scalar_select %p401, %s398, 1
        %s403 = smul.addr %s400, 12
        %s404 = sadd.s32 %s402, %s403
        %s405 = smul.addr %s404, 8
        %s406 = scalar_lea.vmem %s3, %s405
      $region44: #{patch_unembed_forward.1} parent=39 // pred_fallthru
        _
    $region40: #{patch_unembed_forward.1} parent=5 // pred_fallthru
      _
  $region6: #{patch_unembed_forward.1} parent=0 // loop_footer
    %s13 = sadd.s32 1, %s9
  $region7: #{patch_unembed_forward.1} parent=0 // loop_footer_branch
    %8 = sbr.rel target = $region3
  $region8: #{patch_unembed_forward.1} parent=0 // loop_exit
    _

</llo_original>
